<compile_context>
chip_gen: v7x
topology: tpu7x:2x2x1
jax: 0.10.0
libtpu: 0.0.40
codegen_flags: <defaults>
</compile_context>

<pallas_src>
import math
import functools

import jax
import jax.numpy as jnp
from jax.experimental import pallas as pl
from jax.experimental.pallas import tpu as pltpu


def make_positional_encoding_table(max_len, d_model):
    """Builds the pe buffer exactly like the PyTorch __init__: (max_len, 1, d_model), float32."""
    position = jnp.arange(0, max_len, dtype=jnp.float32)[:, None]             # (max_len, 1)
    div_term = jnp.exp(
        jnp.arange(0, d_model, 2, dtype=jnp.float32) * (-math.log(10000.0) / d_model)
    )                                                                          # (d_model//2,)
    angles = position * div_term                                               # (max_len, d_model//2)
    pe = jnp.zeros((max_len, d_model), dtype=jnp.float32)
    pe = pe.at[:, 0::2].set(jnp.sin(angles))
    pe = pe.at[:, 1::2].set(jnp.cos(angles))
    return pe[:, None, :]                                                      # (max_len, 1, d_model)


def _pe_add_kernel(seed_ref, x_ref, pe_ref, o_ref, *, p, training, batch, tile_s):
    # x_ref/o_ref: (tile_s, B*D) lane-dense; pe_ref: (tile_s, D) rows of the table for this tile.
    # Add in float32 (torch adds against a float32 buffer), downcast only at the end.
    pe_rows = pe_ref[...].astype(jnp.float32)
    if batch > 1:
        # Lane-tile across batch: out[:, b*D + d] = pe[:, d]  (matches the flattened x layout).
        pe_rows = jnp.concatenate([pe_rows] * batch, axis=-1)
    y = x_ref[...].astype(jnp.float32) + pe_rows

    if training and p >= 1.0:
        y = jnp.zeros_like(y)                      # avoid inf scale at p == 1
    elif training and p > 0.0:
        # Inverted dropout. Random bits come from a counter-based hash (splitmix32-style
        # finalizer) over the GLOBAL element index mixed with the seed, so every seq tile
        # gets an independent stream and the kernel needs no TPU-only PRNG primitives.
        # TODO(synk): RNG stream differs from torch's; keep-prob 1-p and 1/(1-p) scaling match.
        rows = jax.lax.broadcasted_iota(jnp.int32, y.shape, 0).astype(jnp.uint32)
        cols = jax.lax.broadcasted_iota(jnp.int32, y.shape, 1).astype(jnp.uint32)
        row_off = (pl.program_id(0) * tile_s).astype(jnp.uint32)
        idx = (rows + row_off) * jnp.uint32(y.shape[1]) + cols
        h = idx ^ (seed_ref[0].astype(jnp.uint32) * jnp.uint32(0x9E3779B9))
        h = h ^ (h >> 16)
        h = h * jnp.uint32(0x7FEB352D)
        h = h ^ (h >> 15)
        h = h * jnp.uint32(0x846CA68B)
        h = h ^ (h >> 16)
        # Drop iff h < p * 2^32  ->  keep-prob = 1 - p. One compare + one select + one mul.
        threshold = jnp.uint32(min(int(p * 4294967296.0), 4294967295))
        scale = jnp.float32(1.0 / (1.0 - p))
        y = jnp.where(h >= threshold, y * scale, jnp.float32(0.0))

    o_ref[...] = y.astype(o_ref.dtype)


def positional_encoding_forward(x, pe, *, dropout_p=0.1, training=False, seed=0):
    """
    x  : (seq_len, batch, d_model)   -- seq-first, matching `x + pe[:x.size(0)]`
    pe : (max_len, 1, d_model) float32 buffer
    Returns dropout(x + pe[:seq_len]) with the same shape/dtype as x.
    """
    S, B, D = x.shape
    max_len = pe.shape[0]
    BD = B * D

    # Lane-dense layouts: (S, B*D) for x/out (free reshape of a contiguous array),
    # (max_len, D) for pe, streamed in x's dtype (halves pe traffic for bf16 inputs).
    # TODO(synk): for bf16 x the pe stream is rounded to bf16 before the f32 add (torch keeps f32).
    x2d = jnp.reshape(x, (S, BD))
    pe2d = jnp.reshape(pe, (max_len, D)).astype(x.dtype)

    itemsize = jnp.dtype(x.dtype).itemsize
    row_bytes = BD * itemsize

    # ~6 MiB x blocks. Double-buffered VMEM budget (no sublane padding now that blocks are
    # lane-dense):  2*x + 2*out + 2*pe  ~= 4*6 MiB + 2*(6/B) MiB  <= ~30 MiB  < 48 MiB limit.
    target_block_bytes = 6 * 1024 * 1024
    rows = max(8, target_block_bytes // row_bytes)
    rows = (rows // 8) * 8                     # keep the sublane dim a multiple of 8
    # v7x megacore: keep >= 4 grid steps for long sequences so the ("parallel",) axis
    # actually shards work across both TensorCores.
    if S >= 64:
        rows = min(rows, max(8, (S // 4) // 8 * 8))
    tile_s = int(min(rows, ((S + 7) // 8) * 8))
    grid = (pl.cdiv(S, tile_s),)

    kernel = functools.partial(
        _pe_add_kernel, p=float(dropout_p), training=bool(training), batch=B, tile_s=tile_s
    )
    seed_arr = jnp.array([seed], dtype=jnp.int32)

    cost = pl.CostEstimate(
        flops=S * BD,
        transcendentals=0,
        bytes_accessed=int(2 * S * BD * itemsize + S * D * pe2d.dtype.itemsize),
    )

    out2d = pl.pallas_call(
        kernel,
        out_shape=jax.ShapeDtypeStruct((S, BD), x.dtype),
        grid_spec=pltpu.PrefetchScalarGridSpec(
            num_scalar_prefetch=1,
            grid=grid,
            in_specs=[
                # x block: lane-dense (tile_s, B*D) slab -> contiguous HBM DMA, unmasked stores.
                pl.BlockSpec((tile_s, BD), lambda i, seed: (i, 0)),
                # pe block: lane-dense (tile_s, D) rows of the table for this seq tile.
                pl.BlockSpec((tile_s, D), lambda i, seed: (i, 0)),
            ],
            out_specs=pl.BlockSpec((tile_s, BD), lambda i, seed: (i, 0)),
        ),
        compiler_params=pltpu.CompilerParams(
            # Independent seq tiles -> shardable across v7x's two TensorCores; neutral on v5e/v6e.
            dimension_semantics=("parallel",),
            vmem_limit_bytes=48 * 1024 * 1024,
        ),
        cost_estimate=cost,
    )(seed_arr, x2d, pe2d)

    return jnp.reshape(out2d, (S, B, D))


if __name__ == "__main__":
    # Small shapes consistent with the module: seq=8, batch=2, d_model=32 (seq-first layout).
    S, B, D = 8, 2, 32
    max_len = 64

    key = jax.random.PRNGKey(0)
    x = jax.random.normal(key, (S, B, D), dtype=jnp.float32)
    pe = make_positional_encoding_table(max_len, D)
    ref = x + pe[:S]

    # Eval mode (dropout is identity) -> deterministic, checked against the reference.
    out = jax.block_until_ready(positional_encoding_forward(x, pe, dropout_p=0.1, training=False))
    assert out.shape == (S, B, D) and out.dtype == x.dtype
    assert jnp.allclose(out, ref, atol=1e-6, rtol=1e-6)

    # Training mode: every element must be either 0 (dropped) or the kept value scaled by 1/(1-p).
    p = 0.1
    out_tr = jax.block_until_ready(
        positional_encoding_forward(x, pe, dropout_p=p, training=True, seed=1234)
    )
    dropped = jnp.isclose(out_tr, 0.0, atol=1e-6)
    kept_vals = jnp.where(dropped, 0.0, out_tr)
    kept_ref = jnp.where(dropped, 0.0, ref / (1.0 - p))
    assert jnp.allclose(kept_vals, kept_ref, atol=1e-5, rtol=1e-5)
    assert float(jnp.mean(dropped.astype(jnp.float32))) < 0.5  # loose sanity for p=0.1

    # Larger shape to exercise a multi-step, double-buffered grid (4 seq tiles of 1024 rows).
    S2, B2, D2 = 4096, 2, 128
    x2 = jax.random.normal(jax.random.PRNGKey(1), (S2, B2, D2), dtype=jnp.float32)
    pe2 = make_positional_encoding_table(S2, D2)
    out2 = jax.block_until_ready(
        positional_encoding_forward(x2, pe2, dropout_p=0.1, training=False)
    )
    assert jnp.allclose(out2, x2 + pe2[:S2], atol=1e-6, rtol=1e-6)

    print("KERNEL_OK")
</pallas_src>

<mosaic_0001>
module attributes {stable_mosaic.version = 11 : i64} {
  func.func @_pe_add_kernel(%arg0: i32, %arg1: memref<1xi32, #tpu.memory_space<smem>>, %arg2: memref<8x64xf32, #tpu.memory_space<vmem>>, %arg3: memref<8x32xf32, #tpu.memory_space<vmem>>, %arg4: memref<8x64xf32, #tpu.memory_space<vmem>>) attributes {dimension_semantics = [#tpu.dimension_semantics<parallel>], iteration_bounds = array<i64: 1>, scalar_prefetch = 1 : i64, scratch_operands = 0 : i64, tpu.core_type = #tpu.core_type<tc>, window_params = [{transform_indices = @transform_0, window_bounds = array<i64: 8, 64>}, {transform_indices = @transform_1, window_bounds = array<i64: 8, 32>}, {transform_indices = @transform_2, window_bounds = array<i64: 8, 64>}]} {
    %c0 = arith.constant 0 : index
    %c0_0 = arith.constant 0 : index
    %0 = vector.load %arg3[%c0, %c0_0] : memref<8x32xf32, #tpu.memory_space<vmem>>, vector<8x32xf32>
    %1 = tpu.concatenate %0, %0 in 1 : vector<8x32xf32>, vector<8x32xf32> -> vector<8x64xf32>
    %c0_1 = arith.constant 0 : index
    %c0_2 = arith.constant 0 : index
    %2 = vector.load %arg2[%c0_1, %c0_2] : memref<8x64xf32, #tpu.memory_space<vmem>>, vector<8x64xf32>
    %3 = arith.addf %2, %1 : vector<8x64xf32>
    %c0_3 = arith.constant 0 : index
    %c0_4 = arith.constant 0 : index
    %4 = vector.load %arg4[%c0_3, %c0_4] : memref<8x64xf32, #tpu.memory_space<vmem>>, vector<8x64xf32>
    tpu.vector_store %arg4[%c0_3, %c0_4], %3 {strides = array<i32>} : memref<8x64xf32, #tpu.memory_space<vmem>>, vector<8x64xf32>,
    return
  }
  func.func @transform_0(%arg0: i32, %arg1: memref<1xi32, #tpu.memory_space<smem>>) -> (i32, i32) {
    %c0_i32 = arith.constant 0 : i32
    %c0_i32_0 = arith.constant 0 : i32
    return %arg0, %c0_i32 : i32, i32
  }
  func.func @transform_1(%arg0: i32, %arg1: memref<1xi32, #tpu.memory_space<smem>>) -> (i32, i32) {
    %c0_i32 = arith.constant 0 : i32
    %c0_i32_0 = arith.constant 0 : i32
    return %arg0, %c0_i32 : i32, i32
  }
  func.func @transform_2(%arg0: i32, %arg1: memref<1xi32, #tpu.memory_space<smem>>) -> (i32, i32) {
    %c0_i32 = arith.constant 0 : i32
    %c0_i32_0 = arith.constant 0 : i32
    return %arg0, %c0_i32 : i32, i32
  }
}

</mosaic_0001>

<llo_original>
// kernel: tpu_custom_call.1
$region0: #{tpu_custom_call.1}
  #allocation0 [shape = 'u32[]', space=smem, size = 0x4, offset = 0x4, fixed_abs, tag = 'smem constant byte address 0x4 - core index']
  #allocation1 [shape = 'u32[144,128]{1,0:T(1,128)}', space=vmem, size = 0x12000, scoped, tag = 'internal scratch']
  #allocation2 [shape = 's32[1]{0}', space=sflag, size = 0x4, scoped, tag = 'scoped memory for tpu_custom_call.1']
  #allocation3 [shape = 's32[1]{0:T(128)S(6)}', space=smem, size = 0x200, scoped, tag = 'prefetched SMEM operand 0']
  %s0 = inlined_call_operand.<no memory space> [shape: s32[1], index: 0, kind: input, shape index: {}]
  %s1 = inlined_call_operand.vmem [shape: f32[8,64], index: 1, kind: input, shape index: {}]
  %s2 = inlined_call_operand.vmem [shape: f32[64,32], index: 2, kind: input, shape index: {}]
  %s3 = inlined_call_operand.hbm [shape: f32[8,64], index: 3, kind: output, shape index: {}]
  %s4 = sld [smem:[#allocation0]]
  $region18: #{tpu_custom_call.1} parent=0
    _
  %s6 = ssub.s32 1, %s4
  %s7 = scalar_select 0, %s6, %s4
  %8 = sst [smem:[#allocation3]] %s0
  $region1: #{tpu_custom_call.1} parent=0
    #allocation4 [shape = 'u8[4096]{0}', space=vmem, size = 0x1000, scoped, tag = 'output window, operand 0, single buffered']
    #allocation5 [shape = 's32[1]{0}', space=sflag, size = 0x4, scoped, tag = 'scoped memory for tpu_custom_call.1']
    %9 = vsyncpa [#allocation5], 0
    // Predicated region
    $region2: #{tpu_custom_call.1} parent=1 // pred_check
      _
    $region3: #{tpu_custom_call.1} parent=1 // pred_check_branch
      %11 = sbr.rel (0) target = $region5
    $region4: #{tpu_custom_call.1} parent=1 // pred_region
      _
    $region5: #{tpu_custom_call.1} parent=1 // pred_fallthru
      _
    // Predicated region
    $region6: #{tpu_custom_call.1} parent=1 // pred_check
      _
    $region7: #{tpu_custom_call.1} parent=1 // pred_check_branch
      %13 = sbr.rel (0) target = $region9
    $region8: #{tpu_custom_call.1} parent=1 // pred_region
      _
    $region9: #{tpu_custom_call.1} parent=1 // pred_fallthru
      _
    %v14 = vld [vmem:[%s2] sm:$0xff]
    %16 = vrot.lane.b32.xlu0 %v14, 32
    %v17 = vpop.permute.xlu0 %16
    %vm19 = vcmask 261120
    %v20 = vsel %vm19, %v14, %v17
    %v21 = vld [vmem:[%s1] sm:$0xff]
    %v22 = vadd.f32 %v21, %v20
    %vm23 = vcmask 523264
    %24 = vst.msk [vmem:[#allocation4] sm:$0xff] %vm23, %v22
    // Predicated region
    $region10: #{tpu_custom_call.1} parent=1 // pred_check
      _
    $region11: #{tpu_custom_call.1} parent=1 // pred_check_branch
      %26 = sbr.rel (0) target = $region13
    $region12: #{tpu_custom_call.1} parent=1 // pred_region
      %s28 = ssub.s32 128, 128
      %29 = vsyncadd [#allocation5], %s28
      %s31 = sshll.u32 [#allocation4], 4
      %s32 = int_to_ptr.vmem [resolvable:$true] %s31
      %34 = dma.vmem_to_hbm [thread:$0]  %s32, 128, %s3, [#allocation5]
    $region13: #{tpu_custom_call.1} parent=1 // pred_fallthru
      _
    // Predicated region
    $region14: #{tpu_custom_call.1} parent=1 // pred_check
      _
    $region15: #{tpu_custom_call.1} parent=1 // pred_check_branch
      %36 = sbr.rel (0) target = $region17
    $region16: #{tpu_custom_call.1} parent=1 // pred_region
      %37 = dma.done [#allocation5], 128
    $region17: #{tpu_custom_call.1} parent=1 // pred_fallthru
      _
    %38 = vsyncpa [#allocation5], 1

</llo_original>
